<compile_context>
chip_gen: v7x
topology: tpu7x:2x2x1
jax: 0.10.0
libtpu: 0.0.40
codegen_flags: <defaults>
</compile_context>

<pallas_src>
import jax
import jax.numpy as jnp
from jax.experimental import pallas as pl
from jax.experimental.pallas import tpu as pltpu


def _round_up(a: int, m: int) -> int:
    return ((a + m - 1) // m) * m


def _mlp_kernel(params_ref, x_ref, o_ref):
    """params_ref: SMEM (9,) f32 = [W1_00, W1_01, W1_10, W1_11, b1_0, b1_1,
                                    W2_00, W2_01, b2_0]   (torch (out,in) order)
    x_ref: VMEM (2, TR, 128) -- feature f at x_ref[f], batch on rows x lanes
    o_ref: VMEM (TR, 128) f32
    """
    x0 = x_ref[0].astype(jnp.float32)        # (TR, 128) full vregs
    x1 = x_ref[1].astype(jnp.float32)        # (TR, 128)

    w1_00 = params_ref[0]
    w1_01 = params_ref[1]
    w1_10 = params_ref[2]
    w1_11 = params_ref[3]
    b1_0 = params_ref[4]
    b1_1 = params_ref[5]
    w2_0 = params_ref[6]
    w2_1 = params_ref[7]
    b2_0 = params_ref[8]

    # fc1 + ReLU: h_j = W1[j,0]*x0 + W1[j,1]*x1 + b1[j]   (pure VPU FMAs)
    h0 = jnp.maximum(w1_00 * x0 + w1_01 * x1 + b1_0, 0.0)   # (TR, 128)
    h1 = jnp.maximum(w1_10 * x0 + w1_11 * x1 + b1_1, 0.0)   # (TR, 128)

    # fc2: y = W2[0,0]*h0 + W2[0,1]*h1 + b2[0]  -> full unmasked vst
    o_ref[...] = w2_0 * h0 + w2_1 * h1 + b2_0                # (TR, 128)


def pack_params(w1, b1, w2, b2):
    """Pack torch-layout Linear params into one flat (9,) f32 vector (done once)."""
    return jnp.concatenate([
        jnp.asarray(w1, jnp.float32).reshape(-1),   # W1 (out=2, in=2) row-major
        jnp.asarray(b1, jnp.float32).reshape(-1),   # b1 (2,)
        jnp.asarray(w2, jnp.float32).reshape(-1),   # W2 (out=1, in=2)
        jnp.asarray(b2, jnp.float32).reshape(-1),   # b2 (1,)
    ])


def _jnp_reference(x, params):
    """Plain-XLA fallback (identical semantics)."""
    w1 = params[0:4].reshape(2, 2)
    b1 = params[4:6]
    w2 = params[6:8].reshape(1, 2)
    b2 = params[8:9]
    xf = jnp.asarray(x, jnp.float32)
    h = jnp.maximum(xf @ w1.T + b1, 0.0)
    return h @ w2.T + b2


def simple_nn_forward(x, params, *, row_tile=2048, min_kernel_batch=4096):
    """x: (B, 2). params: (9,) f32 from pack_params. Returns (B, 1) f32.

    row_tile: rows of 128 lanes per grid step (rounded to a multiple of 8).
              2048 rows -> 2 MiB in / 1 MiB out per step.
    min_kernel_batch: below this batch size use a plain jnp fallback (dispatch
              + relayout would dominate the kernel for tiny B).
    """
    B = x.shape[0]
    if B < min_kernel_batch:
        return _jnp_reference(x, params)

    # Sublane+lane dense tiling: batch -> rows x 128 lanes, row tile multiple of 8.
    rows_needed = pl.cdiv(B, 128)
    tr = _round_up(min(row_tile, _round_up(rows_needed, 8)), 8)
    R = _round_up(rows_needed, tr)
    Bp = R * 128

    # Single pad + single transpose/reshape into the final kernel layout.
    # Keep bf16 as-is (halves input HBM bytes on v5e/v6e); everything else -> f32.
    in_dtype = jnp.bfloat16 if x.dtype == jnp.bfloat16 else jnp.float32
    x_pad = jnp.pad(jnp.asarray(x, in_dtype), ((0, Bp - B), (0, 0)))   # (Bp, 2)
    x_t = x_pad.T.reshape(2, R, 128)                                   # (2, R, 128)

    out = pl.pallas_call(
        _mlp_kernel,
        out_shape=jax.ShapeDtypeStruct((R, 128), jnp.float32),
        grid_spec=pltpu.PrefetchScalarGridSpec(
            num_scalar_prefetch=1,                               # params -> SMEM
            grid=(R // tr,),
            in_specs=[pl.BlockSpec((2, tr, 128), lambda i, p: (0, i, 0))],
            out_specs=pl.BlockSpec((tr, 128), lambda i, p: (i, 0)),
        ),
        compiler_params=pltpu.CompilerParams(
            dimension_semantics=("parallel",)),                  # 2-TC sharding on v7x
    )(params, x_t)

    # Free reshape + slice back to the PyTorch (B, 1) convention.
    # (Padded lanes hold bias-derived garbage; they are sliced off here.)
    return out.reshape(-1)[:B].reshape(B, 1)


if __name__ == "__main__":
    key = jax.random.PRNGKey(0)
    kx, k1, k2, k3, k4 = jax.random.split(key, 5)

    batch = 8
    x = jax.random.normal(kx, (batch, 2), dtype=jnp.float32)

    # Deterministic params with nn.Linear(2,2) / nn.Linear(2,1) shapes (out, in).
    w1 = jax.random.normal(k1, (2, 2), dtype=jnp.float32) * 0.5
    b1 = jax.random.normal(k2, (2,), dtype=jnp.float32) * 0.1
    w2 = jax.random.normal(k3, (1, 2), dtype=jnp.float32) * 0.5
    b2 = jax.random.normal(k4, (1,), dtype=jnp.float32) * 0.1

    params = pack_params(w1, b1, w2, b2)   # packed once, outside the per-call path

    # Pure-JAX reference (same semantics as the PyTorch module).
    ref = jnp.maximum(x @ w1.T + b1, 0.0) @ w2.T + b2

    # Force the Pallas kernel path (the default heuristic would use the
    # small-B jnp fallback at batch=8).
    y = simple_nn_forward(x, params, min_kernel_batch=0)
    jax.block_until_ready(y)
    assert y.shape == (batch, 1)
    assert jnp.allclose(y, ref, atol=1e-5), "pallas kernel mismatch vs reference"

    # Also exercise the small-B fallback path.
    y_fb = simple_nn_forward(x, params)
    jax.block_until_ready(y_fb)
    assert jnp.allclose(y_fb, ref, atol=1e-5), "fallback mismatch vs reference"

    print("KERNEL_OK")
</pallas_src>

<mosaic_0001>
module attributes {stable_mosaic.version = 11 : i64} {
  func.func @_mlp_kernel(%arg0: i32, %arg1: memref<9xf32, #tpu.memory_space<smem>>, %arg2: memref<2x8x128xf32, #tpu.memory_space<vmem>>, %arg3: memref<8x128xf32, #tpu.memory_space<vmem>>) attributes {dimension_semantics = [#tpu.dimension_semantics<parallel>], iteration_bounds = array<i64: 1>, scalar_prefetch = 1 : i64, scratch_operands = 0 : i64, tpu.core_type = #tpu.core_type<tc>, window_params = [{transform_indices = @transform_0, window_bounds = array<i64: 2, 8, 128>}, {transform_indices = @transform_1, window_bounds = array<i64: 8, 128>}]} {
    %c0 = arith.constant 0 : index
    %c0_0 = arith.constant 0 : index
    %c0_1 = arith.constant 0 : index
    %0 = vector.load %arg2[%c0, %c0_0, %c0_1] : memref<2x8x128xf32, #tpu.memory_space<vmem>>, vector<1x8x128xf32>
    %1 = vector.shape_cast %0 : vector<1x8x128xf32> to vector<8x128xf32>
    %c1 = arith.constant 1 : index
    %c0_2 = arith.constant 0 : index
    %c0_3 = arith.constant 0 : index
    %2 = vector.load %arg2[%c1, %c0_2, %c0_3] : memref<2x8x128xf32, #tpu.memory_space<vmem>>, vector<1x8x128xf32>
    %3 = vector.shape_cast %2 : vector<1x8x128xf32> to vector<8x128xf32>
    %c0_4 = arith.constant 0 : index
    %4 = memref.load %arg1[%c0_4] : memref<9xf32, #tpu.memory_space<smem>>
    %c1_5 = arith.constant 1 : index
    %5 = memref.load %arg1[%c1_5] : memref<9xf32, #tpu.memory_space<smem>>
    %c2 = arith.constant 2 : index
    %6 = memref.load %arg1[%c2] : memref<9xf32, #tpu.memory_space<smem>>
    %c3 = arith.constant 3 : index
    %7 = memref.load %arg1[%c3] : memref<9xf32, #tpu.memory_space<smem>>
    %c4 = arith.constant 4 : index
    %8 = memref.load %arg1[%c4] : memref<9xf32, #tpu.memory_space<smem>>
    %c5 = arith.constant 5 : index
    %9 = memref.load %arg1[%c5] : memref<9xf32, #tpu.memory_space<smem>>
    %c6 = arith.constant 6 : index
    %10 = memref.load %arg1[%c6] : memref<9xf32, #tpu.memory_space<smem>>
    %c7 = arith.constant 7 : index
    %11 = memref.load %arg1[%c7] : memref<9xf32, #tpu.memory_space<smem>>
    %c8 = arith.constant 8 : index
    %12 = memref.load %arg1[%c8] : memref<9xf32, #tpu.memory_space<smem>>
    %13 = vector.broadcast %4 : f32 to vector<8x128xf32>
    %14 = arith.mulf %13, %1 : vector<8x128xf32>
    %15 = vector.broadcast %5 : f32 to vector<8x128xf32>
    %16 = arith.mulf %15, %3 : vector<8x128xf32>
    %17 = arith.addf %14, %16 : vector<8x128xf32>
    %18 = vector.broadcast %8 : f32 to vector<8x128xf32>
    %19 = arith.addf %17, %18 : vector<8x128xf32>
    %cst = arith.constant 0.000000e+00 : f32
    %20 = vector.broadcast %cst : f32 to vector<8x128xf32>
    %21 = arith.maximumf %19, %20 : vector<8x128xf32>
    %22 = vector.broadcast %6 : f32 to vector<8x128xf32>
    %23 = arith.mulf %22, %1 : vector<8x128xf32>
    %24 = vector.broadcast %7 : f32 to vector<8x128xf32>
    %25 = arith.mulf %24, %3 : vector<8x128xf32>
    %26 = arith.addf %23, %25 : vector<8x128xf32>
    %27 = vector.broadcast %9 : f32 to vector<8x128xf32>
    %28 = arith.addf %26, %27 : vector<8x128xf32>
    %cst_6 = arith.constant 0.000000e+00 : f32
    %29 = vector.broadcast %cst_6 : f32 to vector<8x128xf32>
    %30 = arith.maximumf %28, %29 : vector<8x128xf32>
    %31 = vector.broadcast %10 : f32 to vector<8x128xf32>
    %32 = arith.mulf %31, %21 : vector<8x128xf32>
    %33 = vector.broadcast %11 : f32 to vector<8x128xf32>
    %34 = arith.mulf %33, %30 : vector<8x128xf32>
    %35 = arith.addf %32, %34 : vector<8x128xf32>
    %36 = vector.broadcast %12 : f32 to vector<8x128xf32>
    %37 = arith.addf %35, %36 : vector<8x128xf32>
    %c0_7 = arith.constant 0 : index
    %c0_8 = arith.constant 0 : index
    %38 = vector.load %arg3[%c0_7, %c0_8] : memref<8x128xf32, #tpu.memory_space<vmem>>, vector<8x128xf32>
    tpu.vector_store %arg3[%c0_7, %c0_8], %37 {strides = array<i32>} : memref<8x128xf32, #tpu.memory_space<vmem>>, vector<8x128xf32>,
    return
  }
  func.func @transform_0(%arg0: i32, %arg1: memref<9xf32, #tpu.memory_space<smem>>) -> (i32, i32, i32) {
    %c0_i32 = arith.constant 0 : i32
    %c0_i32_0 = arith.constant 0 : i32
    %c0_i32_1 = arith.constant 0 : i32
    return %c0_i32, %arg0, %c0_i32_0 : i32, i32, i32
  }
  func.func @transform_1(%arg0: i32, %arg1: memref<9xf32, #tpu.memory_space<smem>>) -> (i32, i32) {
    %c0_i32 = arith.constant 0 : i32
    %c0_i32_0 = arith.constant 0 : i32
    return %arg0, %c0_i32 : i32, i32
  }
}

</mosaic_0001>

<llo_original>
// kernel: tpu_custom_call.1
$region0: #{tpu_custom_call.1}
  #allocation0 [shape = 'u32[]', space=smem, size = 0x4, offset = 0x4, fixed_abs, tag = 'smem constant byte address 0x4 - core index']
  #allocation1 [shape = 'u32[144,128]{1,0:T(1,128)}', space=vmem, size = 0x12000, scoped, tag = 'internal scratch']
  #allocation2 [shape = 's32[1]{0}', space=sflag, size = 0x4, scoped, tag = 'scoped memory for tpu_custom_call.1']
  #allocation3 [shape = 'u8[512]{0}', space=smem, size = 0x200, scoped, tag = 'prefetched SMEM operand 0']
  %s0 = inlined_call_operand.hbm [shape: f32[9], index: 0, kind: input, shape index: {}]
  %s1 = inlined_call_operand.hbm [shape: f32[2,8,128], index: 1, kind: input, shape index: {}]
  %s2 = inlined_call_operand.hbm [shape: f32[8,128], index: 2, kind: output, shape index: {}]
  %s3 = sld [smem:[#allocation0]]
  $region18: #{tpu_custom_call.1} parent=0
    _
  %s5 = ssub.s32 1, %s3
  %s6 = scalar_select 0, %s5, %s3
  %8 = dma.hbm_to_smem %s0, 16, [#allocation3], [#allocation2]
  %9 = dma.done [#allocation2], 16
  %10 = sfence
  $region1: #{tpu_custom_call.1} parent=0
    #allocation4 [shape = 'u8[8192]{0}', space=vmem, size = 0x2000, scoped, tag = 'input window, operand 1, single buffered']
    #allocation5 [shape = 's32[1]{0}', space=sflag, size = 0x4, scoped, tag = 'scoped memory for tpu_custom_call.1']
    #allocation6 [shape = 's32[1]{0}', space=sflag, size = 0x4, scoped, tag = 'scoped memory for tpu_custom_call.1']
    #allocation7 [shape = 'u8[4096]{0}', space=vmem, size = 0x1000, scoped, tag = 'output window, operand 0, single buffered']
    %11 = vsyncpa [#allocation5], 0
    %12 = vsyncpa [#allocation6], 0
    // Predicated region
    $region2: #{tpu_custom_call.1} parent=1 // pred_check
      _
    $region3: #{tpu_custom_call.1} parent=1 // pred_check_branch
      %14 = sbr.rel (0) target = $region5
    $region4: #{tpu_custom_call.1} parent=1 // pred_region
      %s16 = ssub.s32 256, 256
      %17 = vsyncadd [#allocation5], %s16
      %s18 = sshll.u32 [#allocation4], 4
      %s19 = int_to_ptr.vmem [resolvable:$true] %s18
      %24 = dma.hbm_to_vmem [thread:$0]  %s1, 256, %s19, [#allocation5], 128, 128, 8
    $region5: #{tpu_custom_call.1} parent=1 // pred_fallthru
      _
    // Predicated region
    $region6: #{tpu_custom_call.1} parent=1 // pred_check
      _
    $region7: #{tpu_custom_call.1} parent=1 // pred_check_branch
      %26 = sbr.rel (0) target = $region9
    $region8: #{tpu_custom_call.1} parent=1 // pred_region
      %27 = dma.done [#allocation5], 256
    $region9: #{tpu_custom_call.1} parent=1 // pred_fallthru
      _
    %v28 = vld [vmem:[#allocation4] sm:$0xff]
    %s29 = scalar_lea.vmem [#allocation4], 8
    %v30 = vld [vmem:[%s29] sm:$0xff]
    %s31 = sld [smem:[#allocation3]]
    %s32 = sld [smem:[#allocation3 + $0x1]]
    %s33 = sld [smem:[#allocation3 + $0x2]]
    %s34 = sld [smem:[#allocation3 + $0x3]]
    %s35 = sld [smem:[#allocation3 + $0x4]]
    %s36 = sld [smem:[#allocation3 + $0x5]]
    %s37 = sld [smem:[#allocation3 + $0x6]]
    %s38 = sld [smem:[#allocation3 + $0x7]]
    %s39 = sld [smem:[#allocation3 + $0x8]]
    %v40 = vstv %s31
    %v41 = vmul.f32 %v40, %v28
    %v42 = vstv %s32
    %v43 = vmul.f32 %v42, %v30
    %v44 = vadd.f32 %v41, %v43
    %v45 = vstv %s35
    %v46 = vadd.f32 %v44, %v45
    %v47 = vmax.f32 %v46, 0.0
    %v48 = vstv %s33
    %v49 = vmul.f32 %v48, %v28
    %v50 = vstv %s34
    %v51 = vmul.f32 %v50, %v30
    %v52 = vadd.f32 %v49, %v51
    %v53 = vstv %s36
    %v54 = vadd.f32 %v52, %v53
    %v55 = vmax.f32 %v54, 0.0
    %v56 = vstv %s37
    %v57 = vmul.f32 %v56, %v47
    %v58 = vstv %s38
    %v59 = vmul.f32 %v58, %v55
    %v60 = vadd.f32 %v57, %v59
    %v61 = vstv %s39
    %v62 = vadd.f32 %v60, %v61
    %63 = vst [vmem:[#allocation7] sm:$0xff] %v62
    // Predicated region
    $region10: #{tpu_custom_call.1} parent=1 // pred_check
      _
    $region11: #{tpu_custom_call.1} parent=1 // pred_check_branch
      %65 = sbr.rel (0) target = $region13
    $region12: #{tpu_custom_call.1} parent=1 // pred_region
      %s67 = ssub.s32 128, 128
      %68 = vsyncadd [#allocation6], %s67
      %s70 = sshll.u32 [#allocation7], 4
      %s71 = int_to_ptr.vmem [resolvable:$true] %s70
      %73 = dma.vmem_to_hbm [thread:$0]  %s71, 128, %s2, [#allocation6]
    $region13: #{tpu_custom_call.1} parent=1 // pred_fallthru
      _
    // Predicated region
    $region14: #{tpu_custom_call.1} parent=1 // pred_check
      _
    $region15: #{tpu_custom_call.1} parent=1 // pred_check_branch
      %75 = sbr.rel (0) target = $region17
    $region16: #{tpu_custom_call.1} parent=1 // pred_region
      %76 = dma.done [#allocation6], 128
    $region17: #{tpu_custom_call.1} parent=1 // pred_fallthru
      _
    %77 = vsyncpa [#allocation5], 1
    %78 = vsyncpa [#allocation6], 1

</llo_original>
